<compile_context>
chip_gen: v5e
topology: v5e:2x2
jax: 0.10.0
libtpu: 0.0.40
codegen_flags: <defaults>
</compile_context>

<pallas_src>
import functools

import jax
import jax.numpy as jnp
from jax.experimental import pallas as pl
from jax.experimental.pallas import tpu as pltpu


# ---------------------------------------------------------------------------
# In-kernel helper: per-head scaled-dot-product attention on merged-head tiles
# ---------------------------------------------------------------------------
def _per_head_attention(q, k, v, num_heads, out_dtype):
    """q: (Sq, d_model) f32, k/v: (Sk, d_model) f32 -> (Sq, d_model) out_dtype."""
    d_model = q.shape[-1]
    d_k = d_model // num_heads
    scale = 1.0 / (d_k ** 0.5)
    outs = []
    for h in range(num_heads):                 # static unroll over heads
        lo, hi = h * d_k, (h + 1) * d_k
        qh = (q[:, lo:hi] * scale).astype(jnp.bfloat16)   # scale Q, not the SxS scores
        kh = k[:, lo:hi].astype(jnp.bfloat16)
        vh = v[:, lo:hi].astype(jnp.bfloat16)
        # s = qh @ kh^T via dot_general contracting last dims (no in-kernel transpose)
        s = jax.lax.dot_general(qh, kh, (((1,), (1,)), ((), ())),
                                preferred_element_type=jnp.float32)
        m = jnp.max(s, axis=-1, keepdims=True)
        p = jnp.exp(s - m)
        l = jnp.sum(p, axis=-1, keepdims=True)
        o = jnp.dot(p.astype(jnp.bfloat16), vh, preferred_element_type=jnp.float32)
        # normalize the (S, d_k) output instead of the (S, S) probabilities
        outs.append(o * pl.reciprocal(l, approx=True))
    # single lane-dense merged-head result
    return jnp.concatenate(outs, axis=-1).astype(out_dtype)


# ---------------------------------------------------------------------------
# Fused kernels
# ---------------------------------------------------------------------------
def _mha_self_kernel(x_ref, w_ref, b_ref, o_ref, *, num_heads):
    # x_ref: (1, S, d_model); w_ref: (d_model, 3*d_model) pre-transposed; b_ref: (1, 3*d_model)
    x = x_ref[0]
    d_model = x.shape[-1]
    w = w_ref[...].astype(jnp.bfloat16)
    qkv = jnp.dot(x.astype(jnp.bfloat16), w,
                  preferred_element_type=jnp.float32) + b_ref[...]
    q = qkv[:, 0:d_model]
    k = qkv[:, d_model:2 * d_model]
    v = qkv[:, 2 * d_model:3 * d_model]
    o_ref[0] = _per_head_attention(q, k, v, num_heads, o_ref.dtype)


def _mha_cross_kernel(xq_ref, xk_ref, xv_ref, w_ref, b_ref, o_ref, *, num_heads):
    # General path: distinct query / key / value sources.
    d_model = xq_ref.shape[-1]
    w = w_ref[...].astype(jnp.bfloat16)
    b = b_ref[...]

    def proj(xr, lo, hi):
        return jnp.dot(xr[0].astype(jnp.bfloat16), w[:, lo:hi],
                       preferred_element_type=jnp.float32) + b[:, lo:hi]

    q = proj(xq_ref, 0, d_model)
    k = proj(xk_ref, d_model, 2 * d_model)
    v = proj(xv_ref, 2 * d_model, 3 * d_model)
    o_ref[0] = _per_head_attention(q, k, v, num_heads, o_ref.dtype)


# ---------------------------------------------------------------------------
# Wrappers
# ---------------------------------------------------------------------------
def _pack_qkv_params(params):
    # PyTorch nn.Linear weights are (out, in); pre-transpose once and pack.
    w = jnp.concatenate(
        [params["wq"].T, params["wk"].T, params["wv"].T], axis=1)   # (d_model, 3*d_model)
    b = jnp.concatenate(
        [params["bq"], params["bk"], params["bv"]]).reshape(1, -1)  # (1, 3*d_model)
    return w, b


def _cost(batch, s_q, s_kv, d_model, num_heads, bytes_accessed):
    d_k = d_model // num_heads
    flops = 2 * batch * (s_q + 2 * s_kv) * d_model * d_model        # projections
    flops += 4 * batch * num_heads * s_q * s_kv * d_k               # QK^T + PV
    trans = batch * num_heads * s_q * (s_kv + 1)                    # exp + reciprocal
    return pl.CostEstimate(flops=flops, transcendentals=trans,
                           bytes_accessed=int(bytes_accessed))


def multi_head_self_attention(x, params, num_heads):
    """Self-attention fast path (query = key = value): x is read from HBM once."""
    B, S, d_model = x.shape
    w_qkv, b_qkv = _pack_qkv_params(params)
    itemsize = x.dtype.itemsize
    bytes_accessed = 2 * B * S * d_model * itemsize + (w_qkv.size + b_qkv.size) * 4
    kernel = functools.partial(_mha_self_kernel, num_heads=num_heads)
    return pl.pallas_call(
        kernel,
        out_shape=jax.ShapeDtypeStruct((B, S, d_model), x.dtype),
        grid=(B,),
        in_specs=[
            pl.BlockSpec((1, S, d_model), lambda b: (b, 0, 0)),
            pl.BlockSpec((d_model, 3 * d_model), lambda b: (0, 0)),
            pl.BlockSpec((1, 3 * d_model), lambda b: (0, 0)),
        ],
        out_specs=pl.BlockSpec((1, S, d_model), lambda b: (b, 0, 0)),
        compiler_params=pltpu.CompilerParams(dimension_semantics=("parallel",)),
        cost_estimate=_cost(B, S, S, d_model, num_heads, bytes_accessed),
    )(x, w_qkv, b_qkv)


def multi_head_attention(query, key, value, params, num_heads):
    """General path (distinct query / key / value sources), same fused structure."""
    B, Sq, d_model = query.shape
    _, Sk, _ = key.shape
    w_qkv, b_qkv = _pack_qkv_params(params)
    itemsize = query.dtype.itemsize
    bytes_accessed = (2 * Sq + 2 * Sk) * B * d_model * itemsize \
        + (w_qkv.size + b_qkv.size) * 4
    kernel = functools.partial(_mha_cross_kernel, num_heads=num_heads)
    return pl.pallas_call(
        kernel,
        out_shape=jax.ShapeDtypeStruct((B, Sq, d_model), query.dtype),
        grid=(B,),
        in_specs=[
            pl.BlockSpec((1, Sq, d_model), lambda b: (b, 0, 0)),
            pl.BlockSpec((1, Sk, d_model), lambda b: (b, 0, 0)),
            pl.BlockSpec((1, Sk, d_model), lambda b: (b, 0, 0)),
            pl.BlockSpec((d_model, 3 * d_model), lambda b: (0, 0)),
            pl.BlockSpec((1, 3 * d_model), lambda b: (0, 0)),
        ],
        out_specs=pl.BlockSpec((1, Sq, d_model), lambda b: (b, 0, 0)),
        compiler_params=pltpu.CompilerParams(dimension_semantics=("parallel",)),
        cost_estimate=_cost(B, Sq, Sk, d_model, num_heads, bytes_accessed),
    )(query, key, value, w_qkv, b_qkv)


# ---------------------------------------------------------------------------
# Pure-JAX fp32 reference (for correctness check)
# ---------------------------------------------------------------------------
def reference_mha(x_q, x_k, x_v, params, num_heads):
    B, Sq, d_model = x_q.shape
    d_k = d_model // num_heads

    def lin(x, w, b):
        return x @ w.T + b

    def split(y):
        return y.reshape(y.shape[0], y.shape[1], num_heads, d_k).transpose(0, 2, 1, 3)

    q = split(lin(x_q, params["wq"], params["bq"]))
    k = split(lin(x_k, params["wk"], params["bk"]))
    v = split(lin(x_v, params["wv"], params["bv"]))
    s = jnp.einsum("bhqd,bhkd->bhqk", q, k) / (d_k ** 0.5)
    p = jax.nn.softmax(s, axis=-1)
    o = jnp.einsum("bhqk,bhkd->bhqd", p, v)
    return o.transpose(0, 2, 1, 3).reshape(B, Sq, d_model)


if __name__ == "__main__":
    B, S, d_model, num_heads = 2, 8, 32, 4

    key = jax.random.PRNGKey(0)
    k_x, k_kv, k_wq, k_bq, k_wk, k_bk, k_wv, k_bv = jax.random.split(key, 8)

    x = jax.random.normal(k_x, (B, S, d_model), dtype=jnp.float32)
    x_kv = jax.random.normal(k_kv, (B, S, d_model), dtype=jnp.float32)

    # PyTorch nn.Linear-style init: uniform(-1/sqrt(in), 1/sqrt(in))
    bound = 1.0 / (d_model ** 0.5)

    def u(k, shape):
        return jax.random.uniform(k, shape, jnp.float32, -bound, bound)

    params = {
        "wq": u(k_wq, (d_model, d_model)), "bq": u(k_bq, (d_model,)),
        "wk": u(k_wk, (d_model, d_model)), "bk": u(k_bk, (d_model,)),
        "wv": u(k_wv, (d_model, d_model)), "bv": u(k_bv, (d_model,)),
    }

    # Self-attention (query = key = value): fully fused fast path.
    out_self = jax.block_until_ready(multi_head_self_attention(x, params, num_heads))
    ref_self = reference_mha(x, x, x, params, num_heads)
    assert out_self.shape == (B, S, d_model)
    err_self = float(jnp.max(jnp.abs(out_self - ref_self)))
    assert jnp.allclose(out_self, ref_self, atol=5e-2, rtol=5e-2), (
        "self-attention mismatch, max abs err %g" % err_self)

    # General path with a distinct key/value source.
    out_cross = jax.block_until_ready(
        multi_head_attention(x, x_kv, x_kv, params, num_heads))
    ref_cross = reference_mha(x, x_kv, x_kv, params, num_heads)
    err_cross = float(jnp.max(jnp.abs(out_cross - ref_cross)))
    assert jnp.allclose(out_cross, ref_cross, atol=5e-2, rtol=5e-2), (
        "cross-attention mismatch, max abs err %g" % err_cross)

    print("KERNEL_OK")
</pallas_src>

<mosaic_0001>
module attributes {stable_mosaic.version = 11 : i64} {
  func.func @_mha_self_kernel(%arg0: i32, %arg1: memref<1x8x32xf32, #tpu.memory_space<vmem>>, %arg2: memref<32x96xf32, #tpu.memory_space<vmem>>, %arg3: memref<1x96xf32, #tpu.memory_space<vmem>>, %arg4: memref<1x8x32xf32, #tpu.memory_space<vmem>>) attributes {dimension_semantics = [#tpu.dimension_semantics<parallel>], iteration_bounds = array<i64: 2>, scalar_prefetch = 0 : i64, scratch_operands = 0 : i64, tpu.core_type = #tpu.core_type<tc>, window_params = [{transform_indices = @transform_0, window_bounds = array<i64: 1, 8, 32>}, {pipeline_mode = #tpu.pipeline_mode<synchronous>, transform_indices = @transform_1, window_bounds = array<i64: 32, 96>}, {pipeline_mode = #tpu.pipeline_mode<synchronous>, transform_indices = @transform_2, window_bounds = array<i64: 1, 96>}, {transform_indices = @transform_3, window_bounds = array<i64: 1, 8, 32>}]} {
    %c0 = arith.constant 0 : index
    %c0_0 = arith.constant 0 : index
    %c0_1 = arith.constant 0 : index
    %0 = vector.load %arg1[%c0, %c0_0, %c0_1] : memref<1x8x32xf32, #tpu.memory_space<vmem>>, vector<1x8x32xf32>
    %1 = vector.shape_cast %0 : vector<1x8x32xf32> to vector<8x32xf32>
    %c0_2 = arith.constant 0 : index
    %c0_3 = arith.constant 0 : index
    %2 = vector.load %arg2[%c0_2, %c0_3] : memref<32x96xf32, #tpu.memory_space<vmem>>, vector<32x96xf32>
    %3 = arith.truncf %2 : vector<32x96xf32> to vector<32x96xbf16>
    %4 = arith.truncf %1 : vector<8x32xf32> to vector<8x32xbf16>
    %cst = arith.constant dense<0.000000e+00> : vector<8x96xf32>
    %5 = tpu.matmul %4, %3, %cst {dimension_numbers = #tpu.dot_dimension_numbers<[1], [0], [0], [1], [0, 0, 1, 1], [], []>} : vector<8x32xbf16>, vector<32x96xbf16>, vector<8x96xf32> -> vector<8x96xf32>
    %c0_4 = arith.constant 0 : index
    %c0_5 = arith.constant 0 : index
    %6 = vector.load %arg3[%c0_4, %c0_5] : memref<1x96xf32, #tpu.memory_space<vmem>>, vector<1x96xf32>
    %7 = vector.broadcast %6 : vector<1x96xf32> to vector<8x96xf32>
    %8 = arith.addf %5, %7 : vector<8x96xf32>
    %9 = vector.extract_strided_slice %8 {offsets = [0, 0], sizes = [8, 32], strides = [1, 1]} : vector<8x96xf32> to vector<8x32xf32>
    %10 = vector.extract_strided_slice %8 {offsets = [0, 32], sizes = [8, 32], strides = [1, 1]} : vector<8x96xf32> to vector<8x32xf32>
    %11 = vector.extract_strided_slice %8 {offsets = [0, 64], sizes = [8, 32], strides = [1, 1]} : vector<8x96xf32> to vector<8x32xf32>
    %12 = vector.extract_strided_slice %9 {offsets = [0, 0], sizes = [8, 8], strides = [1, 1]} : vector<8x32xf32> to vector<8x8xf32>
    %cst_6 = arith.constant 0.353553385 : f32
    %13 = vector.broadcast %cst_6 : f32 to vector<8x8xf32>
    %14 = arith.mulf %12, %13 : vector<8x8xf32>
    %15 = arith.truncf %14 : vector<8x8xf32> to vector<8x8xbf16>
    %16 = vector.extract_strided_slice %10 {offsets = [0, 0], sizes = [8, 8], strides = [1, 1]} : vector<8x32xf32> to vector<8x8xf32>
    %17 = arith.truncf %16 : vector<8x8xf32> to vector<8x8xbf16>
    %18 = vector.extract_strided_slice %11 {offsets = [0, 0], sizes = [8, 8], strides = [1, 1]} : vector<8x32xf32> to vector<8x8xf32>
    %19 = arith.truncf %18 : vector<8x8xf32> to vector<8x8xbf16>
    %cst_7 = arith.constant dense<0.000000e+00> : vector<8x8xf32>
    %20 = tpu.matmul %15, %17, %cst_7 {dimension_numbers = #tpu.dot_dimension_numbers<[1], [1], [0], [0], [0, 0, 1, 0], [], []>} : vector<8x8xbf16>, vector<8x8xbf16>, vector<8x8xf32> -> vector<8x8xf32>
    %cst_8 = arith.constant dense<0xFF800000> : vector<8xf32>
    %21 = vector.multi_reduction <maximumf>, %20, %cst_8 [1] : vector<8x8xf32> to vector<8xf32>
    %22 = vector.shape_cast %21 : vector<8xf32> to vector<8x1xf32>
    %23 = vector.broadcast %22 : vector<8x1xf32> to vector<8x8xf32>
    %24 = arith.subf %20, %23 : vector<8x8xf32>
    %25 = math.exp %24 : vector<8x8xf32>
    %cst_9 = arith.constant dense<0.000000e+00> : vector<8xf32>
    %26 = vector.multi_reduction <add>, %25, %cst_9 [1] : vector<8x8xf32> to vector<8xf32>
    %27 = vector.shape_cast %26 : vector<8xf32> to vector<8x1xf32>
    %28 = arith.truncf %25 : vector<8x8xf32> to vector<8x8xbf16>
    %cst_10 = arith.constant dense<0.000000e+00> : vector<8x8xf32>
    %29 = tpu.matmul %28, %19, %cst_10 {dimension_numbers = #tpu.dot_dimension_numbers<[1], [0], [0], [1], [0, 0, 1, 1], [], []>} : vector<8x8xbf16>, vector<8x8xbf16>, vector<8x8xf32> -> vector<8x8xf32>
    %30 = tpu.reciprocal %27 {approx = true} : vector<8x1xf32> -> vector<8x1xf32>
    %31 = vector.broadcast %30 : vector<8x1xf32> to vector<8x8xf32>
    %32 = arith.mulf %29, %31 : vector<8x8xf32>
    %33 = vector.extract_strided_slice %9 {offsets = [0, 8], sizes = [8, 8], strides = [1, 1]} : vector<8x32xf32> to vector<8x8xf32>
    %cst_11 = arith.constant 0.353553385 : f32
    %34 = vector.broadcast %cst_11 : f32 to vector<8x8xf32>
    %35 = arith.mulf %33, %34 : vector<8x8xf32>
    %36 = arith.truncf %35 : vector<8x8xf32> to vector<8x8xbf16>
    %37 = vector.extract_strided_slice %10 {offsets = [0, 8], sizes = [8, 8], strides = [1, 1]} : vector<8x32xf32> to vector<8x8xf32>
    %38 = arith.truncf %37 : vector<8x8xf32> to vector<8x8xbf16>
    %39 = vector.extract_strided_slice %11 {offsets = [0, 8], sizes = [8, 8], strides = [1, 1]} : vector<8x32xf32> to vector<8x8xf32>
    %40 = arith.truncf %39 : vector<8x8xf32> to vector<8x8xbf16>
    %cst_12 = arith.constant dense<0.000000e+00> : vector<8x8xf32>
    %41 = tpu.matmul %36, %38, %cst_12 {dimension_numbers = #tpu.dot_dimension_numbers<[1], [1], [0], [0], [0, 0, 1, 0], [], []>} : vector<8x8xbf16>, vector<8x8xbf16>, vector<8x8xf32> -> vector<8x8xf32>
    %cst_13 = arith.constant dense<0xFF800000> : vector<8xf32>
    %42 = vector.multi_reduction <maximumf>, %41, %cst_13 [1] : vector<8x8xf32> to vector<8xf32>
    %43 = vector.shape_cast %42 : vector<8xf32> to vector<8x1xf32>
    %44 = vector.broadcast %43 : vector<8x1xf32> to vector<8x8xf32>
    %45 = arith.subf %41, %44 : vector<8x8xf32>
    %46 = math.exp %45 : vector<8x8xf32>
    %cst_14 = arith.constant dense<0.000000e+00> : vector<8xf32>
    %47 = vector.multi_reduction <add>, %46, %cst_14 [1] : vector<8x8xf32> to vector<8xf32>
    %48 = vector.shape_cast %47 : vector<8xf32> to vector<8x1xf32>
    %49 = arith.truncf %46 : vector<8x8xf32> to vector<8x8xbf16>
    %cst_15 = arith.constant dense<0.000000e+00> : vector<8x8xf32>
    %50 = tpu.matmul %49, %40, %cst_15 {dimension_numbers = #tpu.dot_dimension_numbers<[1], [0], [0], [1], [0, 0, 1, 1], [], []>} : vector<8x8xbf16>, vector<8x8xbf16>, vector<8x8xf32> -> vector<8x8xf32>
    %51 = tpu.reciprocal %48 {approx = true} : vector<8x1xf32> -> vector<8x1xf32>
    %52 = vector.broadcast %51 : vector<8x1xf32> to vector<8x8xf32>
    %53 = arith.mulf %50, %52 : vector<8x8xf32>
    %54 = vector.extract_strided_slice %9 {offsets = [0, 16], sizes = [8, 8], strides = [1, 1]} : vector<8x32xf32> to vector<8x8xf32>
    %cst_16 = arith.constant 0.353553385 : f32
    %55 = vector.broadcast %cst_16 : f32 to vector<8x8xf32>
    %56 = arith.mulf %54, %55 : vector<8x8xf32>
    %57 = arith.truncf %56 : vector<8x8xf32> to vector<8x8xbf16>
    %58 = vector.extract_strided_slice %10 {offsets = [0, 16], sizes = [8, 8], strides = [1, 1]} : vector<8x32xf32> to vector<8x8xf32>
    %59 = arith.truncf %58 : vector<8x8xf32> to vector<8x8xbf16>
    %60 = vector.extract_strided_slice %11 {offsets = [0, 16], sizes = [8, 8], strides = [1, 1]} : vector<8x32xf32> to vector<8x8xf32>
    %61 = arith.truncf %60 : vector<8x8xf32> to vector<8x8xbf16>
    %cst_17 = arith.constant dense<0.000000e+00> : vector<8x8xf32>
    %62 = tpu.matmul %57, %59, %cst_17 {dimension_numbers = #tpu.dot_dimension_numbers<[1], [1], [0], [0], [0, 0, 1, 0], [], []>} : vector<8x8xbf16>, vector<8x8xbf16>, vector<8x8xf32> -> vector<8x8xf32>
    %cst_18 = arith.constant dense<0xFF800000> : vector<8xf32>
    %63 = vector.multi_reduction <maximumf>, %62, %cst_18 [1] : vector<8x8xf32> to vector<8xf32>
    %64 = vector.shape_cast %63 : vector<8xf32> to vector<8x1xf32>
    %65 = vector.broadcast %64 : vector<8x1xf32> to vector<8x8xf32>
    %66 = arith.subf %62, %65 : vector<8x8xf32>
    %67 = math.exp %66 : vector<8x8xf32>
    %cst_19 = arith.constant dense<0.000000e+00> : vector<8xf32>
    %68 = vector.multi_reduction <add>, %67, %cst_19 [1] : vector<8x8xf32> to vector<8xf32>
    %69 = vector.shape_cast %68 : vector<8xf32> to vector<8x1xf32>
    %70 = arith.truncf %67 : vector<8x8xf32> to vector<8x8xbf16>
    %cst_20 = arith.constant dense<0.000000e+00> : vector<8x8xf32>
    %71 = tpu.matmul %70, %61, %cst_20 {dimension_numbers = #tpu.dot_dimension_numbers<[1], [0], [0], [1], [0, 0, 1, 1], [], []>} : vector<8x8xbf16>, vector<8x8xbf16>, vector<8x8xf32> -> vector<8x8xf32>
    %72 = tpu.reciprocal %69 {approx = true} : vector<8x1xf32> -> vector<8x1xf32>
    %73 = vector.broadcast %72 : vector<8x1xf32> to vector<8x8xf32>
    %74 = arith.mulf %71, %73 : vector<8x8xf32>
    %75 = vector.extract_strided_slice %9 {offsets = [0, 24], sizes = [8, 8], strides = [1, 1]} : vector<8x32xf32> to vector<8x8xf32>
    %cst_21 = arith.constant 0.353553385 : f32
    %76 = vector.broadcast %cst_21 : f32 to vector<8x8xf32>
    %77 = arith.mulf %75, %76 : vector<8x8xf32>
    %78 = arith.truncf %77 : vector<8x8xf32> to vector<8x8xbf16>
    %79 = vector.extract_strided_slice %10 {offsets = [0, 24], sizes = [8, 8], strides = [1, 1]} : vector<8x32xf32> to vector<8x8xf32>
    %80 = arith.truncf %79 : vector<8x8xf32> to vector<8x8xbf16>
    %81 = vector.extract_strided_slice %11 {offsets = [0, 24], sizes = [8, 8], strides = [1, 1]} : vector<8x32xf32> to vector<8x8xf32>
    %82 = arith.truncf %81 : vector<8x8xf32> to vector<8x8xbf16>
    %cst_22 = arith.constant dense<0.000000e+00> : vector<8x8xf32>
    %83 = tpu.matmul %78, %80, %cst_22 {dimension_numbers = #tpu.dot_dimension_numbers<[1], [1], [0], [0], [0, 0, 1, 0], [], []>} : vector<8x8xbf16>, vector<8x8xbf16>, vector<8x8xf32> -> vector<8x8xf32>
    %cst_23 = arith.constant dense<0xFF800000> : vector<8xf32>
    %84 = vector.multi_reduction <maximumf>, %83, %cst_23 [1] : vector<8x8xf32> to vector<8xf32>
    %85 = vector.shape_cast %84 : vector<8xf32> to vector<8x1xf32>
    %86 = vector.broadcast %85 : vector<8x1xf32> to vector<8x8xf32>
    %87 = arith.subf %83, %86 : vector<8x8xf32>
    %88 = math.exp %87 : vector<8x8xf32>
    %cst_24 = arith.constant dense<0.000000e+00> : vector<8xf32>
    %89 = vector.multi_reduction <add>, %88, %cst_24 [1] : vector<8x8xf32> to vector<8xf32>
    %90 = vector.shape_cast %89 : vector<8xf32> to vector<8x1xf32>
    %91 = arith.truncf %88 : vector<8x8xf32> to vector<8x8xbf16>
    %cst_25 = arith.constant dense<0.000000e+00> : vector<8x8xf32>
    %92 = tpu.matmul %91, %82, %cst_25 {dimension_numbers = #tpu.dot_dimension_numbers<[1], [0], [0], [1], [0, 0, 1, 1], [], []>} : vector<8x8xbf16>, vector<8x8xbf16>, vector<8x8xf32> -> vector<8x8xf32>
    %93 = tpu.reciprocal %90 {approx = true} : vector<8x1xf32> -> vector<8x1xf32>
    %94 = vector.broadcast %93 : vector<8x1xf32> to vector<8x8xf32>
    %95 = arith.mulf %92, %94 : vector<8x8xf32>
    %96 = tpu.concatenate %32, %53, %74, %95 in 1 : vector<8x8xf32>, vector<8x8xf32>, vector<8x8xf32>, vector<8x8xf32> -> vector<8x32xf32>
    %c0_26 = arith.constant 0 : index
    %c0_27 = arith.constant 0 : index
    %c0_28 = arith.constant 0 : index
    %97 = vector.load %arg4[%c0_26, %c0_27, %c0_28] : memref<1x8x32xf32, #tpu.memory_space<vmem>>, vector<1x8x32xf32>
    %98 = vector.shape_cast %97 : vector<1x8x32xf32> to vector<8x32xf32>
    %99 = vector.shape_cast %96 : vector<8x32xf32> to vector<1x8x32xf32>
    tpu.vector_store %arg4[%c0_26, %c0_27, %c0_28], %99 {strides = array<i32>} : memref<1x8x32xf32, #tpu.memory_space<vmem>>, vector<1x8x32xf32>,
    return
  }
  func.func @transform_0(%arg0: i32) -> (i32, i32, i32) {
    %c0_i32 = arith.constant 0 : i32
    %c0_i32_0 = arith.constant 0 : i32
    %c0_i32_1 = arith.constant 0 : i32
    return %arg0, %c0_i32, %c0_i32_0 : i32, i32, i32
  }
  func.func @transform_1(%arg0: i32) -> (i32, i32) {
    %c0_i32 = arith.constant 0 : i32
    %c0_i32_0 = arith.constant 0 : i32
    %c0_i32_1 = arith.constant 0 : i32
    return %c0_i32, %c0_i32_0 : i32, i32
  }
  func.func @transform_2(%arg0: i32) -> (i32, i32) {
    %c0_i32 = arith.constant 0 : i32
    %c0_i32_0 = arith.constant 0 : i32
    %c0_i32_1 = arith.constant 0 : i32
    return %c0_i32, %c0_i32_0 : i32, i32
  }
  func.func @transform_3(%arg0: i32) -> (i32, i32, i32) {
    %c0_i32 = arith.constant 0 : i32
    %c0_i32_0 = arith.constant 0 : i32
    %c0_i32_1 = arith.constant 0 : i32
    return %arg0, %c0_i32, %c0_i32_0 : i32, i32, i32
  }
}

</mosaic_0001>

<llo_original>
// kernel: tpu_custom_call.1
$region0: #{tpu_custom_call.1}
  #allocation0 [shape = 'u32[]', space=smem, size = 0x4, offset = 0x4, fixed_abs, tag = 'smem constant byte address 0x4 - core index']
  #allocation1 [shape = 'u32[72,128]{1,0:T(1,128)}', space=vmem, size = 0x9000, scoped, tag = 'internal scratch']
  %s0 = inlined_call_operand.hbm [shape: f32[2,8,32], index: 0, kind: input, shape index: {}]
  %s1 = inlined_call_operand.hbm [shape: f32[32,96], index: 1, kind: input, shape index: {}]
  %s2 = inlined_call_operand.vmem [shape: f32[1,96], index: 2, kind: input, shape index: {}]
  %s3 = inlined_call_operand.hbm [shape: f32[2,8,32], index: 3, kind: output, shape index: {}]
  %s4 = sld [smem:[#allocation0]]
  $region53: #{tpu_custom_call.1} parent=0
    _
  %s6 = ssub.s32 1, %s4
  %s7 = scalar_select 0, %s6, %s4
  $region1: #{tpu_custom_call.1} parent=0
    #allocation2 [shape = 'u8[8192]{0}', space=vmem, size = 0x2000, scoped, tag = 'input window, operand 0']
    #allocation3 [shape = 's32[2]{0}', space=sflag, size = 0x8, scoped, tag = 'scoped memory for tpu_custom_call.1']
    #allocation4 [shape = 's32[2]{0}', space=sflag, size = 0x8, scoped, tag = 'scoped memory for tpu_custom_call.1']
    #allocation5 [shape = 'u8[16384]{0}', space=vmem, size = 0x4000, scoped, tag = 'input window, operand 1, single buffered']
    #allocation6 [shape = 's32[1]{0}', space=sflag, size = 0x4, scoped, tag = 'scoped memory for tpu_custom_call.1']
    #allocation7 [shape = 'u8[8192]{0}', space=vmem, size = 0x2000, scoped, tag = 'output window, operand 0']
    %8 = vsyncpa [#allocation3], 0
    %s9 = scalar_lea.sflag [#allocation3], 1
    %10 = vsyncpa %s9, 0
    %11 = vsyncpa [#allocation6], 0
    %12 = vsyncpa [#allocation4], 0
    %s13 = scalar_lea.sflag [#allocation4], 1
    %14 = vsyncpa %s13, 0
    loop: start=0, step=1, limit=4
    $region2: #{tpu_custom_call.1} parent=1 // loop_pre_header
      _
    $region3: #{tpu_custom_call.1} parent=1 // loop_header
      %s16 = sphi 0, %s20
      %p17 = scmp.ge.s32.totalorder %s16, 4
      %s26 = sphi 0, %s28
      %s29 = sphi 0, %s26
      %s30 = sphi 0, %s29
      %s46 = sphi 0, %s30
      %s50 = sphi 0, %s50
      %s52 = sphi 0, %s50
      %s53 = sphi 0, %s52
      %s67 = sphi 0, %s53
      %s71 = sphi 0, %s71
      %s73 = sphi 0, %s71
      %s74 = sphi 0, %s73
      %s88 = sphi 0, %s74
      %s94 = sphi 0, %s96
      %s97 = sphi 0, %s94
      %s98 = sphi 0, %s97
      %s114 = sphi 0, %s98
    $region4: #{tpu_custom_call.1} parent=1 // loop_header_branch
      %19 = sbr.rel (%p17) target = $region8
    $region5: #{tpu_custom_call.1} parent=1 // loop_body
      %s21 = ssub.s32 %s16, 1
      %s22 = ssub.s32 %s16, 2
      %s23 = sadd.s32 %s16, 1
      %s24 = ssub.s32 %s16, %s23
      %p25 = scmp.eq.s32.totalorder %s24, 0
      %s27 = sadd.s32 %s26, 1
      %s28 = scalar_select %p25, %s26, %s27
      %p31 = pneg %p25
      %p32 = scmp.eq.s32.totalorder %s16, 1
      %p33 = por %p31, %p32
      %p34 = scmp.ne.s32.totalorder %s26, %s29
      %p35 = scmp.eq.s32.totalorder %s16, 0
      %p36 = por %p34, %p35
      %p37 = scmp.ne.s32.totalorder %s26, %s29
      %p38 = scmp.eq.s32.totalorder %s21, 1
      %p39 = por %p37, %p38
      %p40 = scmp.ne.s32.totalorder %s29, %s30
      %p41 = scmp.eq.s32.totalorder %s21, 0
      %p42 = por %p40, %p41
      %p43 = scmp.ne.s32.totalorder %s29, %s30
      %p44 = scmp.eq.s32.totalorder %s22, 1
      %p45 = por %p43, %p44
      %p47 = scmp.ne.s32.totalorder %s30, %s46
      %p48 = scmp.eq.s32.totalorder %s22, 0
      %p49 = por %p47, %p48
      %s51 = sadd.s32 %s50, 1
      %p54 = scmp.eq.s32.totalorder %s16, 1
      %p55 = scmp.ne.s32.totalorder %s50, %s52
      %p56 = scmp.eq.s32.totalorder %s16, 0
      %p57 = por %p55, %p56
      %p58 = scmp.ne.s32.totalorder %s50, %s52
      %p59 = scmp.eq.s32.totalorder %s21, 1
      %p60 = por %p58, %p59
      %p61 = scmp.ne.s32.totalorder %s52, %s53
      %p62 = scmp.eq.s32.totalorder %s21, 0
      %p63 = por %p61, %p62
      %p64 = scmp.ne.s32.totalorder %s52, %s53
      %p65 = scmp.eq.s32.totalorder %s22, 1
      %p66 = por %p64, %p65
      %p68 = scmp.ne.s32.totalorder %s53, %s67
      %p69 = scmp.eq.s32.totalorder %s22, 0
      %p70 = por %p68, %p69
      %s72 = sadd.s32 %s71, 1
      %p75 = scmp.eq.s32.totalorder %s16, 1
      %p76 = scmp.ne.s32.totalorder %s71, %s73
      %p77 = scmp.eq.s32.totalorder %s16, 0
      %p78 = por %p76, %p77
      %p79 = scmp.ne.s32.totalorder %s71, %s73
      %p80 = scmp.eq.s32.totalorder %s21, 1
      %p81 = por %p79, %p80
      %p82 = scmp.ne.s32.totalorder %s73, %s74
      %p83 = scmp.eq.s32.totalorder %s21, 0
      %p84 = por %p82, %p83
      %p85 = scmp.ne.s32.totalorder %s73, %s74
      %p86 = scmp.eq.s32.totalorder %s22, 1
      %p87 = por %p85, %p86
      %p89 = scmp.ne.s32.totalorder %s74, %s88
      %p90 = scmp.eq.s32.totalorder %s22, 0
      %p91 = por %p89, %p90
      %s92 = ssub.s32 %s16, %s23
      %p93 = scmp.eq.s32.totalorder %s92, 0
      %s95 = sadd.s32 %s94, 1
      %s96 = scalar_select %p93, %s94, %s95
      %p99 = pneg %p93
      %p100 = scmp.eq.s32.totalorder %s16, 1
      %p101 = por %p99, %p100
      %p102 = scmp.ne.s32.totalorder %s94, %s97
      %p103 = scmp.eq.s32.totalorder %s16, 0
      %p104 = por %p102, %p103
      %p105 = scmp.ne.s32.totalorder %s94, %s97
      %p106 = scmp.eq.s32.totalorder %s21, 1
      %p107 = por %p105, %p106
      %p108 = scmp.ne.s32.totalorder %s97, %s98
      %p109 = scmp.eq.s32.totalorder %s21, 0
      %p110 = por %p108, %p109
      %p111 = scmp.ne.s32.totalorder %s97, %s98
      %p112 = scmp.eq.s32.totalorder %s22, 1
      %p113 = por %p111, %p112
      %p115 = scmp.ne.s32.totalorder %s98, %s114
      %p116 = scmp.eq.s32.totalorder %s22, 0
      %p117 = por %p115, %p116
      %p118 = scmp.le.s32.totalorder 1, %s16
      %p119 = scmp.lt.s32.totalorder %s16, 3
      %p120 = pnand %p118, %p119
      %p121 = pneg %p120
      // Predicated region
      $region9: #{tpu_custom_call.1} parent=5 // pred_check
        _
      $region10: #{tpu_custom_call.1} parent=5 // pred_check_branch
        %123 = sbr.rel (%p120) target = $region12
      $region11: #{tpu_custom_call.1} parent=5 // pred_region
        %s124 = ssub.s32 %s16, 1
        // Predicated region
        $region13: #{tpu_custom_call.1} parent=11 // pred_check
          %p125 = pneg %p63
        $region14: #{tpu_custom_call.1} parent=11 // pred_check_branch
          %127 = sbr.rel (%p125) target = $region16
        $region15: #{tpu_custom_call.1} parent=11 // pred_region
          %129 = vsyncadd [#allocation6], 0
          %s130 = sshll.u32 %s1, 4
          %s131 = int_to_ptr.hbm [resolvable:$true] %s130
          %s132 = sshll.u32 [#allocation5], 4
          %s133 = int_to_ptr.vmem [resolvable:$true] %s132
          %138 = dma.hbm_to_vmem [thread:$0]  %s131, 512, %s133, [#allocation6], 128, 128, 8
        $region16: #{tpu_custom_call.1} parent=11 // pred_fallthru
          _
        // Predicated region
        $region17: #{tpu_custom_call.1} parent=11 // pred_check
          %p139 = pneg %p84
        $region18: #{tpu_custom_call.1} parent=11 // pred_check_branch
          %141 = sbr.rel (%p139) target = $region20
        $region19: #{tpu_custom_call.1} parent=11 // pred_region
          _
        $region20: #{tpu_custom_call.1} parent=11 // pred_fallthru
          _
      $region12: #{tpu_custom_call.1} parent=5 // pred_fallthru
        _
      %p142 = scmp.lt.s32.totalorder %s16, 2
      // Predicated region
      $region21: #{tpu_custom_call.1} parent=5 // pred_check
        %p143 = pneg %p142
      $region22: #{tpu_custom_call.1} parent=5 // pred_check_branch
        %145 = sbr.rel (%p143) target = $region24
      $region23: #{tpu_custom_call.1} parent=5 // pred_region
        // Predicated region
        $region25: #{tpu_custom_call.1} parent=23 // pred_check
          %p146 = pneg %p36
        $region26: #{tpu_custom_call.1} parent=23 // pred_check_branch
          %148 = sbr.rel (%p146) target = $region28
        $region27: #{tpu_custom_call.1} parent=23 // pred_region
          %s149 = sand.u32 %s26, 1
          %s150 = scalar_lea.sflag [#allocation3], %s149
          %s151 = sand.u32 %s26, 1
          %s152 = smul.addr %s151, 8
          %s153 = scalar_lea.vmem [#allocation2], %s152
          %155 = vsyncadd %s150, 0
          %s156 = smul.addr %s16, 8
          %s157 = scalar_lea.hbm %s0, %s156
          %s159 = sshll.u32 %s157, 4
          %s160 = int_to_ptr.hbm [resolvable:$true] %s159
          %s161 = sshll.u32 %s153, 4
          %s162 = int_to_ptr.vmem [resolvable:$true] %s161
          %164 = dma.hbm_to_vmem [thread:$0]  %s160, 128, %s162, %s150
        $region28: #{tpu_custom_call.1} parent=23 // pred_fallthru
          _
      $region24: #{tpu_custom_call.1} parent=5 // pred_fallthru
        _
      %p165 = scmp.le.s32.totalorder 1, %s16
      %p166 = scmp.lt.s32.totalorder %s16, 3
      %p167 = pnand %p165, %p166
      %p168 = pneg %p167
      // Predicated region
      $region29: #{tpu_custom_call.1} parent=5 // pred_check
        _
      $region30: #{tpu_custom_call.1} parent=5 // pred_check_branch
        %170 = sbr.rel (%p167) target = $region32
      $region31: #{tpu_custom_call.1} parent=5 // pred_region
        %s171 = ssub.s32 %s16, 1
        %s172 = sand.u32 %s29, 1
        %s173 = scalar_lea.sflag [#allocation3], %s172
        %s174 = sand.u32 %s29, 1
        %s175 = smul.addr %s174, 8
        %s176 = scalar_lea.vmem [#allocation2], %s175
        // Predicated region
        $region33: #{tpu_custom_call.1} parent=31 // pred_check
          %p177 = pneg %p42
        $region34: #{tpu_custom_call.1} parent=31 // pred_check_branch
          %179 = sbr.rel (%p177) target = $region36
        $region35: #{tpu_custom_call.1} parent=31 // pred_region
          %181 = dma.done %s173, 128
        $region36: #{tpu_custom_call.1} parent=31 // pred_fallthru
          _
        // Predicated region
        $region37: #{tpu_custom_call.1} parent=31 // pred_check
          %p182 = pneg %p63
        $region38: #{tpu_custom_call.1} parent=31 // pred_check_branch
          %184 = sbr.rel (%p182) target = $region40
        $region39: #{tpu_custom_call.1} parent=31 // pred_region
          %186 = dma.done [#allocation6], 512
        $region40: #{tpu_custom_call.1} parent=31 // pred_fallthru
          _
        %s187 = sand.u32 %s29, 1
        %s188 = scalar_lea.sflag [#allocation3], %s187
        %s189 = sand.u32 %s29, 1
        %s190 = smul.addr %s189, 8
        %s191 = scalar_lea.vmem [#allocation2], %s190
        %p192 = pneg %p42
        %p193 = pneg %p39
        %p194 = pneg %p63
        %p195 = pneg %p60
        %p196 = pneg %p84
        %p197 = pneg %p81
        %p198 = pneg %p110
        %p199 = pneg %p107
        %s200 = sand.u32 %s97, 1
        %s201 = scalar_lea.sflag [#allocation4], %s200
        %s202 = sand.u32 %s97, 1
        %s203 = smul.addr %s202, 8
        %s204 = scalar_lea.vmem [#allocation7], %s203
        %v206 = vld [vmem:[%s176] sm:$0xff]
        %v207 = vld [vmem:[#allocation5] sm:$0xff]
        %v208 = vld [vmem:[#allocation5 + $0x8] sm:$0xff]
        %v209 = vld [vmem:[#allocation5 + $0x10] sm:$0xff]
        %v210 = vld [vmem:[#allocation5 + $0x18] sm:$0xff]
        %v211 = vpack.c.bf16 %v208, %v207
        %v212 = vpack.c.bf16 %v210, %v209
        %v213 = vpack.c.bf16 %v206, %v206
        %v214 = vld [vmem:[%s2] sm:$0x1]
        %v216 = vperm.slane %v214, 0
        %vm218 = vcmask 261120
        %v220 = vsel %vm218, %v213, 0
        %222 = vmatpush.bf16.msra.mxu0 0
        %223 = vmatpush.bf16.msra.mxu0 0
        %224 = vmatpush.bf16.msra.mxu0 0
        %225 = vmatpush.bf16.msra.mxu0 0
        %226 = vmatpush.bf16.msra.mxu0 0
        %227 = vmatpush.bf16.msra.mxu0 0
        %228 = vmatpush.bf16.msra.mxu0 %v212
        %229 = vmatpush.bf16.msra.mxu0 %v211
        %230 = vmatmul.bf16.gmra.mxu0 %v220
        %v231 = vpop.f32.mrf.mxu0
        %v232 = vadd.f32 %v216, %v231
        %v233 = vpop.f32.mrf.mxu0
        %234 = vdwg.mxu0
        %v235 = vmul.f32 %v232, 0.35355338
        %v236 = vpack.c.bf16 %v235, %v235
        %v237 = vpack.c.bf16 %v232, %v232
        %239 = vrot.lane.b32.xlu0 %v237, 96
        %v240 = vpop.permute.xlu0 %239
        %vm241 = vcmask 64512
        %v243 = vsel %vm241, %v236, 0
        %v246 = vsel %vm241, %v240, 0
        %248 = vmatpush.bf16.xpose.msra.mxu0 0
        %249 = vmatpush.bf16.xpose.msra.mxu0 0
        %250 = vmatpush.bf16.xpose.msra.mxu0 0
        %251 = vmatpush.bf16.xpose.msra.mxu0 0
        %252 = vmatpush.bf16.xpose.msra.mxu0 0
        %253 = vmatpush.bf16.xpose.msra.mxu0 0
        %254 = vmatpush.bf16.xpose.msra.mxu0 0
        %255 = vmatpush.bf16.xpose.msra.mxu0 %v246
        %256 = vmatmul.bf16.gmra.mxu0 %v243
        %v257 = vpop.f32.mrf.mxu0
        %v258 = vadd.f32 0.0, %v257
        %v259 = vpop.f32.mrf.mxu0
        %260 = vdwg.mxu0
        %v261 = vsel %vm241, %v258, -inf
        %262 = vmax.xlane.f32.xlu0 %v261
        %v263 = vpop.xlane.xlu0 %262
        %v264 = vsub.f32 %v258, %v263
        %v265 = vmul.f32 %v264, 1.442695
        %v266 = vpow.pop %v265
        %v267 = vsel %vm241, %v266, 0.0
        %268 = vadd.xlane.f32.xlu0 %v267
        %v269 = vpop.xlane.xlu0 %268
        %v270 = vpack.c.bf16 %v266, %v266
        %271 = vrot.lane.b32.xlu0 %v237, 64
        %v272 = vpop.permute.xlu0 %271
        %v274 = vsel %vm241, %v270, 0
        %vm276 = vcmask 1043456
        %v278 = vsel %vm276, %v272, 0
        %280 = vmatpush.bf16.msra.mxu0 0
        %281 = vmatpush.bf16.msra.mxu0 0
        %282 = vmatpush.bf16.msra.mxu0 0
        %283 = vmatpush.bf16.msra.mxu0 0
        %284 = vmatpush.bf16.msra.mxu0 0
        %285 = vmatpush.bf16.msra.mxu0 0
        %286 = vmatpush.bf16.msra.mxu0 0
        %287 = vmatpush.bf16.msra.mxu0 %v278
        %288 = vmatmul.bf16.gmra.mxu0 %v274
        %v289 = vpop.f32.mrf.mxu0
        %v290 = vadd.f32 0.0, %v289
        %v291 = vpop.f32.mrf.mxu0
        %292 = vdwg.mxu0
        %v293 = vrcp.pop %v269
        %v294 = vmul.f32 %v290, %v293
        %296 = vrot.lane.b32.xlu0 %v236, 120
        %v297 = vpop.permute.xlu0 %296
        %298 = vrot.lane.b32.xlu0 %v237, 88
        %v299 = vpop.permute.xlu0 %298
        %v301 = vsel %vm241, %v297, 0
        %v304 = vsel %vm241, %v299, 0
        %306 = vmatpush.bf16.xpose.msra.mxu0 0
        %307 = vmatpush.bf16.xpose.msra.mxu0 0
        %308 = vmatpush.bf16.xpose.msra.mxu0 0
        %309 = vmatpush.bf16.xpose.msra.mxu0 0
        %310 = vmatpush.bf16.xpose.msra.mxu0 0
        %311 = vmatpush.bf16.xpose.msra.mxu0 0
        %312 = vmatpush.bf16.xpose.msra.mxu0 0
        %313 = vmatpush.bf16.xpose.msra.mxu0 %v304
        %314 = vmatmul.bf16.gmra.mxu0 %v301
        %v315 = vpop.f32.mrf.mxu0
        %v316 = vadd.f32 0.0, %v315
        %v317 = vpop.f32.mrf.mxu0
        %318 = vdwg.mxu0
        %v319 = vsel %vm241, %v316, -inf
        %320 = vmax.xlane.f32.xlu0 %v319
        %v321 = vpop.xlane.xlu0 %320
        %v322 = vsub.f32 %v316, %v321
        %v323 = vmul.f32 %v322, 1.442695
        %v324 = vpow.pop %v323
        %v325 = vsel %vm241, %v324, 0.0
        %326 = vadd.xlane.f32.xlu0 %v325
        %v327 = vpop.xlane.xlu0 %326
        %v328 = vpack.c.bf16 %v324, %v324
        %329 = vrot.lane.b32.xlu0 %v237, 56
        %v330 = vpop.permute.xlu0 %329
        %v332 = vsel %vm241, %v328, 0
        %v335 = vsel %vm276, %v330, 0
        %337 = vmatpush.bf16.msra.mxu0 0
        %338 = vmatpush.bf16.msra.mxu0 0
        %339 = vmatpush.bf16.msra.mxu0 0
        %340 = vmatpush.bf16.msra.mxu0 0
        %341 = vmatpush.bf16.msra.mxu0 0
        %342 = vmatpush.bf16.msra.mxu0 0
        %343 = vmatpush.bf16.msra.mxu0 0
        %344 = vmatpush.bf16.msra.mxu0 %v335
        %345 = vmatmul.bf16.gmra.mxu0 %v332
        %v346 = vpop.f32.mrf.mxu0
        %v347 = vadd.f32 0.0, %v346
        %v348 = vpop.f32.mrf.mxu0
        %349 = vdwg.mxu0
        %v350 = vrcp.pop %v327
        %v351 = vmul.f32 %v347, %v350
        %352 = vrot.lane.b32.xlu0 %v236, 112
        %v353 = vpop.permute.xlu0 %352
        %354 = vrot.lane.b32.xlu0 %v237, 80
        %v355 = vpop.permute.xlu0 %354
        %v357 = vsel %vm241, %v353, 0
        %v360 = vsel %vm241, %v355, 0
        %362 = vmatpush.bf16.xpose.msra.mxu0 0
        %363 = vmatpush.bf16.xpose.msra.mxu0 0
        %364 = vmatpush.bf16.xpose.msra.mxu0 0
        %365 = vmatpush.bf16.xpose.msra.mxu0 0
        %366 = vmatpush.bf16.xpose.msra.mxu0 0
        %367 = vmatpush.bf16.xpose.msra.mxu0 0
        %368 = vmatpush.bf16.xpose.msra.mxu0 0
        %369 = vmatpush.bf16.xpose.msra.mxu0 %v360
        %370 = vmatmul.bf16.gmra.mxu0 %v357
        %v371 = vpop.f32.mrf.mxu0
        %v372 = vadd.f32 0.0, %v371
        %v373 = vpop.f32.mrf.mxu0
        %374 = vdwg.mxu0
        %v375 = vsel %vm241, %v372, -inf
        %376 = vmax.xlane.f32.xlu0 %v375
        %v377 = vpop.xlane.xlu0 %376
        %v378 = vsub.f32 %v372, %v377
        %v379 = vmul.f32 %v378, 1.442695
        %v380 = vpow.pop %v379
        %v381 = vsel %vm241, %v380, 0.0
        %382 = vadd.xlane.f32.xlu0 %v381
        %v383 = vpop.xlane.xlu0 %382
        %v384 = vpack.c.bf16 %v380, %v380
        %385 = vrot.lane.b32.xlu0 %v237, 48
        %v386 = vpop.permute.xlu0 %385
        %v388 = vsel %vm241, %v384, 0
        %v391 = vsel %vm276, %v386, 0
        %393 = vmatpush.bf16.msra.mxu0 0
        %394 = vmatpush.bf16.msra.mxu0 0
        %395 = vmatpush.bf16.msra.mxu0 0
        %396 = vmatpush.bf16.msra.mxu0 0
        %397 = vmatpush.bf16.msra.mxu0 0
        %398 = vmatpush.bf16.msra.mxu0 0
        %399 = vmatpush.bf16.msra.mxu0 0
        %400 = vmatpush.bf16.msra.mxu0 %v391
        %401 = vmatmul.bf16.gmra.mxu0 %v388
        %v402 = vpop.f32.mrf.mxu0
        %v403 = vadd.f32 0.0, %v402
        %v404 = vpop.f32.mrf.mxu0
        %405 = vdwg.mxu0
        %v406 = vrcp.pop %v383
        %v407 = vmul.f32 %v403, %v406
        %408 = vrot.lane.b32.xlu0 %v236, 104
        %v409 = vpop.permute.xlu0 %408
        %410 = vrot.lane.b32.xlu0 %v237, 72
        %v411 = vpop.permute.xlu0 %410
        %v413 = vsel %vm241, %v409, 0
        %v416 = vsel %vm241, %v411, 0
        %418 = vmatpush.bf16.xpose.msra.mxu0 0
        %419 = vmatpush.bf16.xpose.msra.mxu0 0
        %420 = vmatpush.bf16.xpose.msra.mxu0 0
        %421 = vmatpush.bf16.xpose.msra.mxu0 0
        %422 = vmatpush.bf16.xpose.msra.mxu0 0
        %423 = vmatpush.bf16.xpose.msra.mxu0 0
        %424 = vmatpush.bf16.xpose.msra.mxu0 0
        %425 = vmatpush.bf16.xpose.msra.mxu0 %v416
        %426 = vmatmul.bf16.gmra.mxu0 %v413
        %v427 = vpop.f32.mrf.mxu0
        %v428 = vadd.f32 0.0, %v427
        %v429 = vpop.f32.mrf.mxu0
        %430 = vdwg.mxu0
        %v431 = vsel %vm241, %v428, -inf
        %432 = vmax.xlane.f32.xlu0 %v431
        %v433 = vpop.xlane.xlu0 %432
        %v434 = vsub.f32 %v428, %v433
        %v435 = vmul.f32 %v434, 1.442695
        %v436 = vpow.pop %v435
        %v437 = vsel %vm241, %v436, 0.0
        %438 = vadd.xlane.f32.xlu0 %v437
        %v439 = vpop.xlane.xlu0 %438
        %v440 = vpack.c.bf16 %v436, %v436
        %441 = vrot.lane.b32.xlu0 %v237, 40
        %v442 = vpop.permute.xlu0 %441
        %v444 = vsel %vm241, %v440, 0
        %v447 = vsel %vm276, %v442, 0
        %449 = vmatpush.bf16.msra.mxu0 0
        %450 = vmatpush.bf16.msra.mxu0 0
        %451 = vmatpush.bf16.msra.mxu0 0
        %452 = vmatpush.bf16.msra.mxu0 0
        %453 = vmatpush.bf16.msra.mxu0 0
        %454 = vmatpush.bf16.msra.mxu0 0
        %455 = vmatpush.bf16.msra.mxu0 0
        %456 = vmatpush.bf16.msra.mxu0 %v447
        %457 = vmatmul.bf16.gmra.mxu0 %v444
        %v458 = vpop.f32.mrf.mxu0
        %v459 = vadd.f32 0.0, %v458
        %v460 = vpop.f32.mrf.mxu0
        %461 = vdwg.mxu0
        %v462 = vrcp.pop %v439
        %v463 = vmul.f32 %v459, %v462
        %465 = vrot.lane.b32.xlu0 %v351, 8
        %v466 = vpop.permute.xlu0 %465
        %469 = vrot.lane.b32.xlu0 %v407, 16
        %v470 = vpop.permute.xlu0 %469
        %473 = vrot.lane.b32.xlu0 %v463, 24
        %v474 = vpop.permute.xlu0 %473
        %v476 = vsel %vm241, %v294, %v466
        %vm477 = vcmask 130048
        %v478 = vsel %vm477, %v476, %v470
        %vm479 = vcmask 195584
        %v480 = vsel %vm479, %v478, %v474
        %481 = vst.msk [vmem:[%s204] sm:$0xff] %vm218, %v480
        %s482 = sand.u32 %s97, 1
        %s483 = scalar_lea.sflag [#allocation4], %s482
        %s484 = sand.u32 %s97, 1
        %s485 = smul.addr %s484, 8
        %s486 = scalar_lea.vmem [#allocation7], %s485
        // Predicated region
        $region41: #{tpu_custom_call.1} parent=31 // pred_check
          %p487 = pneg %p107
        $region42: #{tpu_custom_call.1} parent=31 // pred_check_branch
          %489 = sbr.rel (%p487) target = $region44
        $region43: #{tpu_custom_call.1} parent=31 // pred_region
          %491 = vsyncadd %s483, 0
          %s492 = smul.addr %s21, 8
          %s493 = scalar_lea.hbm %s3, %s492
          %s495 = sshll.u32 %s486, 4
          %s496 = int_to_ptr.vmem [resolvable:$true] %s495
          %s497 = sshll.u32 %s493, 4
          %s498 = int_to_ptr.hbm [resolvable:$true] %s497
          %500 = dma.vmem_to_hbm [thread:$0]  %s496, 128, %s498, %s483
        $region44: #{tpu_custom_call.1} parent=31 // pred_fallthru
          _
      $region32: #{tpu_custom_call.1} parent=5 // pred_fallthru
        _
      %p501 = scmp.le.s32.totalorder 2, %s16
      // Predicated region
      $region45: #{tpu_custom_call.1} parent=5 // pred_check
        %p502 = pneg %p501
      $region46: #{tpu_custom_call.1} parent=5 // pred_check_branch
        %504 = sbr.rel (%p502) target = $region48
      $region47: #{tpu_custom_call.1} parent=5 // pred_region
        %s505 = ssub.s32 %s16, 2
        // Predicated region
        $region49: #{tpu_custom_call.1} parent=47 // pred_check
          %p506 = pneg %p113
        $region50: #{tpu_custom_call.1} parent=47 // pred_check_branch
          %508 = sbr.rel (%p506) target = $region52
        $region51: #{tpu_custom_call.1} parent=47 // pred_region
          %s509 = sand.u32 %s98, 1
          %s510 = scalar_lea.sflag [#allocation4], %s509
          %s511 = sand.u32 %s98, 1
          %s512 = smul.addr %s511, 8
          %s513 = scalar_lea.vmem [#allocation7], %s512
          %515 = dma.done %s510, 128
        $region52: #{tpu_custom_call.1} parent=47 // pred_fallthru
          _
      $region48: #{tpu_custom_call.1} parent=5 // pred_fallthru
        _
    $region6: #{tpu_custom_call.1} parent=1 // loop_footer
      %s20 = sadd.s32 1, %s16
    $region7: #{tpu_custom_call.1} parent=1 // loop_footer_branch
      %15 = sbr.rel target = $region3
    $region8: #{tpu_custom_call.1} parent=1 // loop_exit
      _
    %516 = vsyncpa [#allocation3], 1
    %s517 = scalar_lea.sflag [#allocation3], 1
    %518 = vsyncpa %s517, 1
    %519 = vsyncpa [#allocation6], 1
    %520 = vsyncpa [#allocation4], 1
    %s521 = scalar_lea.sflag [#allocation4], 1
    %522 = vsyncpa %s521, 1

</llo_original>
